<compile_context>
chip_gen: v6e
topology: v6e:2x2x1
jax: 0.10.0
libtpu: 0.0.40
codegen_flags: <defaults>
</compile_context>

<pallas_src>
import jax
import jax.numpy as jnp
from jax.experimental import pallas as pl
from jax.experimental.pallas import tpu as pltpu

Nt = 100
T = 1.0
dt = T / Nt


def burgers_mlp_kernel(xt_ref,                 # (2, TM)  f32: row 0 = x, row 1 = t_step
                       w1t_ref, b1_ref,        # (H, 2) f32, (H, 1) f32
                       w2t_ref, b2_ref,        # (H, H) bf16, (H, 1) f32
                       w3t_ref, b3_ref,        # (H, H) bf16, (H, 1) f32
                       w4t_ref, b4_ref,        # (1, H) bf16, (1, 1) f32
                       o_ref):                 # (1, TM) f32
    x_row = xt_ref[0:1, :]                                   # (1, TM)
    t_row = xt_ref[1:2, :] * jnp.float32(1.0 / Nt)           # t_step / Nt

    # Layer 1: W1^T @ [x; t_norm] + b1 as two rank-1 broadcasts on the VPU.
    h = w1t_ref[:, 0:1] * x_row + w1t_ref[:, 1:2] * t_row + b1_ref[...]   # (H, TM) f32
    h = jnp.tanh(h.astype(jnp.bfloat16))                      # bf16 tanh -> bf16

    # Layer 2: bf16 MXU matmul, f32 accumulation.
    h = jnp.dot(w2t_ref[...], h, preferred_element_type=jnp.float32) + b2_ref[...]
    h = jnp.tanh(h.astype(jnp.bfloat16))

    # Layer 3.
    h = jnp.dot(w3t_ref[...], h, preferred_element_type=jnp.float32) + b3_ref[...]
    h = jnp.tanh(h.astype(jnp.bfloat16))

    # Output layer: (1,H) @ (H,TM) -> (1,TM); lane-dense store.
    o_ref[...] = jnp.dot(w4t_ref[...], h, preferred_element_type=jnp.float32) + b4_ref[...]


def burgers_forward(x, t_step, params, *, tm=512):
    """x: (N,) or (N,1); t_step: (N,) int/float. Returns (N, 1) float32.

    tm must be a multiple of 128. N may be any size (padded to a tile multiple).
    """
    assert tm % 128 == 0, "row tile must be a multiple of 128 lanes"
    w1, b1, w2, b2, w3, b3, w4, b4 = params
    H = w1.shape[1]

    x_flat = x.reshape(-1).astype(jnp.float32)
    t_flat = t_step.reshape(-1).astype(jnp.float32)
    N = x_flat.shape[0]

    # Batch-in-lanes input slab: (2, N); normalization by 1/Nt happens in-kernel.
    xt = jnp.stack([x_flat, t_flat], axis=0)

    n_tiles = pl.cdiv(N, tm)
    n_pad = n_tiles * tm
    if n_pad != N:
        xt = jnp.pad(xt, ((0, 0), (0, n_pad - N)))

    # Glue-side transposes / casts (constants; cast once, not per grid step).
    w1t = w1.T.astype(jnp.float32)                 # (H, 2)
    b1t = b1.reshape(H, 1).astype(jnp.float32)
    w2t = w2.T.astype(jnp.bfloat16)                # (H, H) bf16 -> single-pass MXU
    b2t = b2.reshape(H, 1).astype(jnp.float32)
    w3t = w3.T.astype(jnp.bfloat16)
    b3t = b3.reshape(H, 1).astype(jnp.float32)
    w4t = w4.reshape(1, H).astype(jnp.bfloat16)    # (H, 1) -> (1, H)
    b4t = b4.reshape(1, 1).astype(jnp.float32)

    rows = lambda i: (0, i)     # batch-tiled operands (lane axis tiled)
    full = lambda i: (0, 0)     # constant weights / biases: same block every step

    out = pl.pallas_call(
        burgers_mlp_kernel,
        out_shape=jax.ShapeDtypeStruct((1, n_pad), jnp.float32),
        grid_spec=pltpu.PrefetchScalarGridSpec(
            num_scalar_prefetch=0,
            grid=(n_tiles,),
            in_specs=[
                pl.BlockSpec((2, tm), rows),    # [x; t_step]
                pl.BlockSpec((H, 2), full),     # W1^T
                pl.BlockSpec((H, 1), full),     # b1
                pl.BlockSpec((H, H), full),     # W2^T (bf16)
                pl.BlockSpec((H, 1), full),     # b2
                pl.BlockSpec((H, H), full),     # W3^T (bf16)
                pl.BlockSpec((H, 1), full),     # b3
                pl.BlockSpec((1, H), full),     # W4^T (bf16)
                pl.BlockSpec((1, 1), full),     # b4
            ],
            out_specs=pl.BlockSpec((1, tm), rows),
        ),
        compiler_params=pltpu.CompilerParams(
            dimension_semantics=("parallel",)),
    )(xt, w1t, b1t, w2t, b2t, w3t, b3t, w4t, b4t)

    # (1, n_pad) -> (N, 1); drop padded rows.
    return out.reshape(n_pad, 1)[:N]


def init_params(key, hidden_dim=64):
    """PyTorch-style U(-1/sqrt(fan_in), 1/sqrt(fan_in)) init, f32, (in, out) layout."""
    keys = jax.random.split(key, 8)

    def lin(kw, kb, fan_in, fan_out):
        bound = 1.0 / (fan_in ** 0.5)
        w = jax.random.uniform(kw, (fan_in, fan_out), jnp.float32, -bound, bound)
        b = jax.random.uniform(kb, (1, fan_out), jnp.float32, -bound, bound)
        return w, b

    w1, b1 = lin(keys[0], keys[1], 2, hidden_dim)
    w2, b2 = lin(keys[2], keys[3], hidden_dim, hidden_dim)
    w3, b3 = lin(keys[4], keys[5], hidden_dim, hidden_dim)
    w4, b4 = lin(keys[6], keys[7], hidden_dim, 1)
    return (w1, b1, w2, b2, w3, b3, w4, b4)


def reference_forward(x, t_step, params):
    """Pure-JAX f32 reference matching the PyTorch module semantics exactly."""
    w1, b1, w2, b2, w3, b3, w4, b4 = params
    t_norm = (t_step.astype(jnp.float32) / Nt).reshape(-1, 1)
    inputs = jnp.concatenate([x.reshape(-1, 1).astype(jnp.float32), t_norm], axis=-1)
    h = jnp.tanh(inputs @ w1 + b1)
    h = jnp.tanh(h @ w2 + b2)
    h = jnp.tanh(h @ w3 + b3)
    return h @ w4 + b4


if __name__ == "__main__":
    key = jax.random.PRNGKey(0)
    k_param, k_x, k_t = jax.random.split(key, 3)

    hidden_dim = 64
    N = 300  # not a multiple of the tile -> exercises the padding path

    params = init_params(k_param, hidden_dim)
    x = jax.random.normal(k_x, (N, 1), dtype=jnp.float32)
    t_step = jax.random.randint(k_t, (N,), 0, Nt, dtype=jnp.int32)

    # tm=256 -> 2-step "parallel" grid (both TensorCores active on v7x).
    out = burgers_forward(x, t_step, params, tm=256)
    out = jax.block_until_ready(out)

    ref = reference_forward(x, t_step, params)
    assert out.shape == (N, 1)
    # bf16 MXU passes + bf16 tanh => loosened tolerance vs the f32 reference
    # (tanh-bounded activations; observed error is ~1e-2 worst case).
    assert bool(jnp.allclose(out, ref, atol=5e-2, rtol=5e-2)), (
        f"max abs err {float(jnp.max(jnp.abs(out - ref)))}")

    print("KERNEL_OK")
</pallas_src>

<mosaic_0001>
module attributes {stable_mosaic.version = 11 : i64} {
  func.func @burgers_mlp_kernel(%arg0: i32, %arg1: memref<2x256xf32, #tpu.memory_space<vmem>>, %arg2: memref<64x2xf32, #tpu.memory_space<vmem>>, %arg3: memref<64x1xf32, #tpu.memory_space<vmem>>, %arg4: memref<64x64xbf16, #tpu.memory_space<vmem>>, %arg5: memref<64x1xf32, #tpu.memory_space<vmem>>, %arg6: memref<64x64xbf16, #tpu.memory_space<vmem>>, %arg7: memref<64x1xf32, #tpu.memory_space<vmem>>, %arg8: memref<1x64xbf16, #tpu.memory_space<vmem>>, %arg9: memref<1x1xf32, #tpu.memory_space<vmem>>, %arg10: memref<1x256xf32, #tpu.memory_space<vmem>>) attributes {dimension_semantics = [#tpu.dimension_semantics<parallel>], iteration_bounds = array<i64: 2>, scalar_prefetch = 0 : i64, scratch_operands = 0 : i64, tpu.core_type = #tpu.core_type<tc>, window_params = [{transform_indices = @transform_0, window_bounds = array<i64: 2, 256>}, {pipeline_mode = #tpu.pipeline_mode<synchronous>, transform_indices = @transform_1, window_bounds = array<i64: 64, 2>}, {pipeline_mode = #tpu.pipeline_mode<synchronous>, transform_indices = @transform_2, window_bounds = array<i64: 64, 1>}, {pipeline_mode = #tpu.pipeline_mode<synchronous>, transform_indices = @transform_3, window_bounds = array<i64: 64, 64>}, {pipeline_mode = #tpu.pipeline_mode<synchronous>, transform_indices = @transform_4, window_bounds = array<i64: 64, 1>}, {pipeline_mode = #tpu.pipeline_mode<synchronous>, transform_indices = @transform_5, window_bounds = array<i64: 64, 64>}, {pipeline_mode = #tpu.pipeline_mode<synchronous>, transform_indices = @transform_6, window_bounds = array<i64: 64, 1>}, {pipeline_mode = #tpu.pipeline_mode<synchronous>, transform_indices = @transform_7, window_bounds = array<i64: 1, 64>}, {pipeline_mode = #tpu.pipeline_mode<synchronous>, transform_indices = @transform_8, window_bounds = array<i64: 1, 1>}, {transform_indices = @transform_9, window_bounds = array<i64: 1, 256>}]} {
    %c0 = arith.constant 0 : index
    %c0_0 = arith.constant 0 : index
    %0 = vector.load %arg1[%c0, %c0_0] : memref<2x256xf32, #tpu.memory_space<vmem>>, vector<1x256xf32>
    %c1 = arith.constant 1 : index
    %c0_1 = arith.constant 0 : index
    %1 = vector.load %arg1[%c1, %c0_1] : memref<2x256xf32, #tpu.memory_space<vmem>>, vector<1x256xf32>
    %cst = arith.constant 0.00999999977 : f32
    %2 = vector.broadcast %cst : f32 to vector<1x256xf32>
    %3 = arith.mulf %1, %2 : vector<1x256xf32>
    %c0_2 = arith.constant 0 : index
    %c0_3 = arith.constant 0 : index
    %4 = vector.load %arg2[%c0_2, %c0_3] : memref<64x2xf32, #tpu.memory_space<vmem>>, vector<64x1xf32>
    %5 = vector.broadcast %4 : vector<64x1xf32> to vector<64x256xf32>
    %6 = vector.broadcast %0 : vector<1x256xf32> to vector<64x256xf32>
    %7 = arith.mulf %5, %6 : vector<64x256xf32>
    %c0_4 = arith.constant 0 : index
    %c1_5 = arith.constant 1 : index
    %8 = vector.load %arg2[%c0_4, %c1_5] : memref<64x2xf32, #tpu.memory_space<vmem>>, vector<64x1xf32>
    %9 = vector.broadcast %8 : vector<64x1xf32> to vector<64x256xf32>
    %10 = vector.broadcast %3 : vector<1x256xf32> to vector<64x256xf32>
    %11 = arith.mulf %9, %10 : vector<64x256xf32>
    %12 = arith.addf %7, %11 : vector<64x256xf32>
    %c0_6 = arith.constant 0 : index
    %c0_7 = arith.constant 0 : index
    %13 = vector.load %arg3[%c0_6, %c0_7] : memref<64x1xf32, #tpu.memory_space<vmem>>, vector<64x1xf32>
    %14 = vector.broadcast %13 : vector<64x1xf32> to vector<64x256xf32>
    %15 = arith.addf %12, %14 : vector<64x256xf32>
    %16 = arith.truncf %15 : vector<64x256xf32> to vector<64x256xbf16>
    %17 = math.tanh %16 : vector<64x256xbf16>
    %c0_8 = arith.constant 0 : index
    %c0_9 = arith.constant 0 : index
    %18 = vector.load %arg4[%c0_8, %c0_9] : memref<64x64xbf16, #tpu.memory_space<vmem>>, vector<64x64xbf16>
    %cst_10 = arith.constant dense<0.000000e+00> : vector<64x256xf32>
    %19 = tpu.matmul %18, %17, %cst_10 {dimension_numbers = #tpu.dot_dimension_numbers<[1], [0], [0], [1], [0, 0, 1, 1], [], []>} : vector<64x64xbf16>, vector<64x256xbf16>, vector<64x256xf32> -> vector<64x256xf32>
    %c0_11 = arith.constant 0 : index
    %c0_12 = arith.constant 0 : index
    %20 = vector.load %arg5[%c0_11, %c0_12] : memref<64x1xf32, #tpu.memory_space<vmem>>, vector<64x1xf32>
    %21 = vector.broadcast %20 : vector<64x1xf32> to vector<64x256xf32>
    %22 = arith.addf %19, %21 : vector<64x256xf32>
    %23 = arith.truncf %22 : vector<64x256xf32> to vector<64x256xbf16>
    %24 = math.tanh %23 : vector<64x256xbf16>
    %c0_13 = arith.constant 0 : index
    %c0_14 = arith.constant 0 : index
    %25 = vector.load %arg6[%c0_13, %c0_14] : memref<64x64xbf16, #tpu.memory_space<vmem>>, vector<64x64xbf16>
    %cst_15 = arith.constant dense<0.000000e+00> : vector<64x256xf32>
    %26 = tpu.matmul %25, %24, %cst_15 {dimension_numbers = #tpu.dot_dimension_numbers<[1], [0], [0], [1], [0, 0, 1, 1], [], []>} : vector<64x64xbf16>, vector<64x256xbf16>, vector<64x256xf32> -> vector<64x256xf32>
    %c0_16 = arith.constant 0 : index
    %c0_17 = arith.constant 0 : index
    %27 = vector.load %arg7[%c0_16, %c0_17] : memref<64x1xf32, #tpu.memory_space<vmem>>, vector<64x1xf32>
    %28 = vector.broadcast %27 : vector<64x1xf32> to vector<64x256xf32>
    %29 = arith.addf %26, %28 : vector<64x256xf32>
    %30 = arith.truncf %29 : vector<64x256xf32> to vector<64x256xbf16>
    %31 = math.tanh %30 : vector<64x256xbf16>
    %c0_18 = arith.constant 0 : index
    %c0_19 = arith.constant 0 : index
    %32 = vector.load %arg8[%c0_18, %c0_19] : memref<1x64xbf16, #tpu.memory_space<vmem>>, vector<1x64xbf16>
    %cst_20 = arith.constant dense<0.000000e+00> : vector<1x256xf32>
    %33 = tpu.matmul %32, %31, %cst_20 {dimension_numbers = #tpu.dot_dimension_numbers<[1], [0], [0], [1], [0, 0, 1, 1], [], []>} : vector<1x64xbf16>, vector<64x256xbf16>, vector<1x256xf32> -> vector<1x256xf32>
    %c0_21 = arith.constant 0 : index
    %c0_22 = arith.constant 0 : index
    %34 = vector.load %arg9[%c0_21, %c0_22] : memref<1x1xf32, #tpu.memory_space<vmem>>, vector<1x1xf32>
    %35 = vector.broadcast %34 : vector<1x1xf32> to vector<1x256xf32>
    %36 = arith.addf %33, %35 : vector<1x256xf32>
    %c0_23 = arith.constant 0 : index
    %c0_24 = arith.constant 0 : index
    %37 = vector.load %arg10[%c0_23, %c0_24] : memref<1x256xf32, #tpu.memory_space<vmem>>, vector<1x256xf32>
    tpu.vector_store %arg10[%c0_23, %c0_24], %36 {strides = array<i32>} : memref<1x256xf32, #tpu.memory_space<vmem>>, vector<1x256xf32>,
    return
  }
  func.func @transform_0(%arg0: i32) -> (i32, i32) {
    %c0_i32 = arith.constant 0 : i32
    %c0_i32_0 = arith.constant 0 : i32
    return %c0_i32, %arg0 : i32, i32
  }
  func.func @transform_1(%arg0: i32) -> (i32, i32) {
    %c0_i32 = arith.constant 0 : i32
    %c0_i32_0 = arith.constant 0 : i32
    %c0_i32_1 = arith.constant 0 : i32
    return %c0_i32, %c0_i32_0 : i32, i32
  }
  func.func @transform_2(%arg0: i32) -> (i32, i32) {
    %c0_i32 = arith.constant 0 : i32
    %c0_i32_0 = arith.constant 0 : i32
    %c0_i32_1 = arith.constant 0 : i32
    return %c0_i32, %c0_i32_0 : i32, i32
  }
  func.func @transform_3(%arg0: i32) -> (i32, i32) {
    %c0_i32 = arith.constant 0 : i32
    %c0_i32_0 = arith.constant 0 : i32
    %c0_i32_1 = arith.constant 0 : i32
    return %c0_i32, %c0_i32_0 : i32, i32
  }
  func.func @transform_4(%arg0: i32) -> (i32, i32) {
    %c0_i32 = arith.constant 0 : i32
    %c0_i32_0 = arith.constant 0 : i32
    %c0_i32_1 = arith.constant 0 : i32
    return %c0_i32, %c0_i32_0 : i32, i32
  }
  func.func @transform_5(%arg0: i32) -> (i32, i32) {
    %c0_i32 = arith.constant 0 : i32
    %c0_i32_0 = arith.constant 0 : i32
    %c0_i32_1 = arith.constant 0 : i32
    return %c0_i32, %c0_i32_0 : i32, i32
  }
  func.func @transform_6(%arg0: i32) -> (i32, i32) {
    %c0_i32 = arith.constant 0 : i32
    %c0_i32_0 = arith.constant 0 : i32
    %c0_i32_1 = arith.constant 0 : i32
    return %c0_i32, %c0_i32_0 : i32, i32
  }
  func.func @transform_7(%arg0: i32) -> (i32, i32) {
    %c0_i32 = arith.constant 0 : i32
    %c0_i32_0 = arith.constant 0 : i32
    %c0_i32_1 = arith.constant 0 : i32
    return %c0_i32, %c0_i32_0 : i32, i32
  }
  func.func @transform_8(%arg0: i32) -> (i32, i32) {
    %c0_i32 = arith.constant 0 : i32
    %c0_i32_0 = arith.constant 0 : i32
    %c0_i32_1 = arith.constant 0 : i32
    return %c0_i32, %c0_i32_0 : i32, i32
  }
  func.func @transform_9(%arg0: i32) -> (i32, i32) {
    %c0_i32 = arith.constant 0 : i32
    %c0_i32_0 = arith.constant 0 : i32
    return %c0_i32, %arg0 : i32, i32
  }
}

</mosaic_0001>

<llo_original>
// kernel: tpu_custom_call.1
$region0: #{tpu_custom_call.1}
  #allocation0 [shape = 'u32[]', space=smem, size = 0x4, offset = 0x4, fixed_abs, tag = 'smem constant byte address 0x4 - core index']
  #allocation1 [shape = 'u32[144,128]{1,0:T(1,128)}', space=vmem, size = 0x12000, scoped, tag = 'internal scratch']
  #allocation2 [shape = 'f32[1,1]{1,0:T(1,128)S(1)}', space=vmem, size = 0x200, scoped, tag = 'scoped memory for tpu_custom_call.1']
  %s0 = inlined_call_operand.vmem [shape: f32[2,512], index: 0, kind: input, shape index: {}]
  %s1 = inlined_call_operand.vmem [shape: f32[64,2], index: 1, kind: input, shape index: {}]
  %s2 = inlined_call_operand.vmem [shape: f32[64,1], index: 2, kind: input, shape index: {}]
  %s3 = inlined_call_operand.vmem [shape: bf16[64,64], index: 3, kind: input, shape index: {}]
  %s4 = inlined_call_operand.vmem [shape: f32[64,1], index: 4, kind: input, shape index: {}]
  %s5 = inlined_call_operand.vmem [shape: bf16[64,64], index: 5, kind: input, shape index: {}]
  %s6 = inlined_call_operand.vmem [shape: f32[64,1], index: 6, kind: input, shape index: {}]
  %s7 = inlined_call_operand.vmem [shape: bf16[1,64], index: 7, kind: input, shape index: {}]
  %s8 = inlined_call_operand.<no memory space> [shape: f32[1,1], index: 8, kind: input, shape index: {}]
  %s9 = inlined_call_operand.hbm [shape: f32[1,512], index: 9, kind: output, shape index: {}]
  %s10 = sld [smem:[#allocation0]]
  $region69: #{tpu_custom_call.1} parent=0
    _
  %s12 = ssub.s32 1, %s10
  %s13 = scalar_select 0, %s12, %s10
  %v14 = vstv %s8
  %15 = vst [vmem:[#allocation2] sm:$0x1] %v14
  $region1: #{tpu_custom_call.1} parent=0
    #allocation3 [shape = 'u8[2048]{0}', space=vmem, size = 0x800, scoped, tag = 'output window, operand 0']
    #allocation4 [shape = 's32[2]{0}', space=sflag, size = 0x8, scoped, tag = 'scoped memory for tpu_custom_call.1']
    %16 = vsyncpa [#allocation4], 0
    %s17 = scalar_lea.sflag [#allocation4], 1
    %18 = vsyncpa %s17, 0
    loop: start=0, step=1, limit=4
    $region2: #{tpu_custom_call.1} parent=1 // loop_pre_header
      _
    $region3: #{tpu_custom_call.1} parent=1 // loop_header
      %s20 = sphi 0, %s24
      %p21 = scmp.ge.s32.totalorder %s20, 4
      %s30 = sphi 0, %s32
      %s33 = sphi 0, %s30
      %s34 = sphi 0, %s33
      %s50 = sphi 0, %s34
      %s54 = sphi 0, %s54
      %s56 = sphi 0, %s54
      %s57 = sphi 0, %s56
      %s71 = sphi 0, %s57
      %s75 = sphi 0, %s75
      %s77 = sphi 0, %s75
      %s78 = sphi 0, %s77
      %s92 = sphi 0, %s78
      %s96 = sphi 0, %s96
      %s98 = sphi 0, %s96
      %s99 = sphi 0, %s98
      %s113 = sphi 0, %s99
      %s117 = sphi 0, %s117
      %s119 = sphi 0, %s117
      %s120 = sphi 0, %s119
      %s134 = sphi 0, %s120
      %s138 = sphi 0, %s138
      %s140 = sphi 0, %s138
      %s141 = sphi 0, %s140
      %s155 = sphi 0, %s141
      %s159 = sphi 0, %s159
      %s161 = sphi 0, %s159
      %s162 = sphi 0, %s161
      %s176 = sphi 0, %s162
      %s180 = sphi 0, %s180
      %s182 = sphi 0, %s180
      %s183 = sphi 0, %s182
      %s197 = sphi 0, %s183
      %s201 = sphi 0, %s201
      %s203 = sphi 0, %s201
      %s204 = sphi 0, %s203
      %s218 = sphi 0, %s204
      %s224 = sphi 0, %s226
      %s227 = sphi 0, %s224
      %s228 = sphi 0, %s227
      %s244 = sphi 0, %s228
    $region4: #{tpu_custom_call.1} parent=1 // loop_header_branch
      %23 = sbr.rel (%p21) target = $region8
    $region5: #{tpu_custom_call.1} parent=1 // loop_body
      %s25 = ssub.s32 %s20, 1
      %s26 = ssub.s32 %s20, 2
      %s27 = sadd.s32 %s20, 1
      %s28 = ssub.s32 %s20, %s27
      %p29 = scmp.eq.s32.totalorder %s28, 0
      %s31 = sadd.s32 %s30, 1
      %s32 = scalar_select %p29, %s30, %s31
      %p35 = pneg %p29
      %p36 = scmp.eq.s32.totalorder %s20, 1
      %p37 = por %p35, %p36
      %p38 = scmp.ne.s32.totalorder %s30, %s33
      %p39 = scmp.eq.s32.totalorder %s20, 0
      %p40 = por %p38, %p39
      %p41 = scmp.ne.s32.totalorder %s30, %s33
      %p42 = scmp.eq.s32.totalorder %s25, 1
      %p43 = por %p41, %p42
      %p44 = scmp.ne.s32.totalorder %s33, %s34
      %p45 = scmp.eq.s32.totalorder %s25, 0
      %p46 = por %p44, %p45
      %p47 = scmp.ne.s32.totalorder %s33, %s34
      %p48 = scmp.eq.s32.totalorder %s26, 1
      %p49 = por %p47, %p48
      %p51 = scmp.ne.s32.totalorder %s34, %s50
      %p52 = scmp.eq.s32.totalorder %s26, 0
      %p53 = por %p51, %p52
      %s55 = sadd.s32 %s54, 1
      %p58 = scmp.eq.s32.totalorder %s20, 1
      %p59 = scmp.ne.s32.totalorder %s54, %s56
      %p60 = scmp.eq.s32.totalorder %s20, 0
      %p61 = por %p59, %p60
      %p62 = scmp.ne.s32.totalorder %s54, %s56
      %p63 = scmp.eq.s32.totalorder %s25, 1
      %p64 = por %p62, %p63
      %p65 = scmp.ne.s32.totalorder %s56, %s57
      %p66 = scmp.eq.s32.totalorder %s25, 0
      %p67 = por %p65, %p66
      %p68 = scmp.ne.s32.totalorder %s56, %s57
      %p69 = scmp.eq.s32.totalorder %s26, 1
      %p70 = por %p68, %p69
      %p72 = scmp.ne.s32.totalorder %s57, %s71
      %p73 = scmp.eq.s32.totalorder %s26, 0
      %p74 = por %p72, %p73
      %s76 = sadd.s32 %s75, 1
      %p79 = scmp.eq.s32.totalorder %s20, 1
      %p80 = scmp.ne.s32.totalorder %s75, %s77
      %p81 = scmp.eq.s32.totalorder %s20, 0
      %p82 = por %p80, %p81
      %p83 = scmp.ne.s32.totalorder %s75, %s77
      %p84 = scmp.eq.s32.totalorder %s25, 1
      %p85 = por %p83, %p84
      %p86 = scmp.ne.s32.totalorder %s77, %s78
      %p87 = scmp.eq.s32.totalorder %s25, 0
      %p88 = por %p86, %p87
      %p89 = scmp.ne.s32.totalorder %s77, %s78
      %p90 = scmp.eq.s32.totalorder %s26, 1
      %p91 = por %p89, %p90
      %p93 = scmp.ne.s32.totalorder %s78, %s92
      %p94 = scmp.eq.s32.totalorder %s26, 0
      %p95 = por %p93, %p94
      %s97 = sadd.s32 %s96, 1
      %p100 = scmp.eq.s32.totalorder %s20, 1
      %p101 = scmp.ne.s32.totalorder %s96, %s98
      %p102 = scmp.eq.s32.totalorder %s20, 0
      %p103 = por %p101, %p102
      %p104 = scmp.ne.s32.totalorder %s96, %s98
      %p105 = scmp.eq.s32.totalorder %s25, 1
      %p106 = por %p104, %p105
      %p107 = scmp.ne.s32.totalorder %s98, %s99
      %p108 = scmp.eq.s32.totalorder %s25, 0
      %p109 = por %p107, %p108
      %p110 = scmp.ne.s32.totalorder %s98, %s99
      %p111 = scmp.eq.s32.totalorder %s26, 1
      %p112 = por %p110, %p111
      %p114 = scmp.ne.s32.totalorder %s99, %s113
      %p115 = scmp.eq.s32.totalorder %s26, 0
      %p116 = por %p114, %p115
      %s118 = sadd.s32 %s117, 1
      %p121 = scmp.eq.s32.totalorder %s20, 1
      %p122 = scmp.ne.s32.totalorder %s117, %s119
      %p123 = scmp.eq.s32.totalorder %s20, 0
      %p124 = por %p122, %p123
      %p125 = scmp.ne.s32.totalorder %s117, %s119
      %p126 = scmp.eq.s32.totalorder %s25, 1
      %p127 = por %p125, %p126
      %p128 = scmp.ne.s32.totalorder %s119, %s120
      %p129 = scmp.eq.s32.totalorder %s25, 0
      %p130 = por %p128, %p129
      %p131 = scmp.ne.s32.totalorder %s119, %s120
      %p132 = scmp.eq.s32.totalorder %s26, 1
      %p133 = por %p131, %p132
      %p135 = scmp.ne.s32.totalorder %s120, %s134
      %p136 = scmp.eq.s32.totalorder %s26, 0
      %p137 = por %p135, %p136
      %s139 = sadd.s32 %s138, 1
      %p142 = scmp.eq.s32.totalorder %s20, 1
      %p143 = scmp.ne.s32.totalorder %s138, %s140
      %p144 = scmp.eq.s32.totalorder %s20, 0
      %p145 = por %p143, %p144
      %p146 = scmp.ne.s32.totalorder %s138, %s140
      %p147 = scmp.eq.s32.totalorder %s25, 1
      %p148 = por %p146, %p147
      %p149 = scmp.ne.s32.totalorder %s140, %s141
      %p150 = scmp.eq.s32.totalorder %s25, 0
      %p151 = por %p149, %p150
      %p152 = scmp.ne.s32.totalorder %s140, %s141
      %p153 = scmp.eq.s32.totalorder %s26, 1
      %p154 = por %p152, %p153
      %p156 = scmp.ne.s32.totalorder %s141, %s155
      %p157 = scmp.eq.s32.totalorder %s26, 0
      %p158 = por %p156, %p157
      %s160 = sadd.s32 %s159, 1
      %p163 = scmp.eq.s32.totalorder %s20, 1
      %p164 = scmp.ne.s32.totalorder %s159, %s161
      %p165 = scmp.eq.s32.totalorder %s20, 0
      %p166 = por %p164, %p165
      %p167 = scmp.ne.s32.totalorder %s159, %s161
      %p168 = scmp.eq.s32.totalorder %s25, 1
      %p169 = por %p167, %p168
      %p170 = scmp.ne.s32.totalorder %s161, %s162
      %p171 = scmp.eq.s32.totalorder %s25, 0
      %p172 = por %p170, %p171
      %p173 = scmp.ne.s32.totalorder %s161, %s162
      %p174 = scmp.eq.s32.totalorder %s26, 1
      %p175 = por %p173, %p174
      %p177 = scmp.ne.s32.totalorder %s162, %s176
      %p178 = scmp.eq.s32.totalorder %s26, 0
      %p179 = por %p177, %p178
      %s181 = sadd.s32 %s180, 1
      %p184 = scmp.eq.s32.totalorder %s20, 1
      %p185 = scmp.ne.s32.totalorder %s180, %s182
      %p186 = scmp.eq.s32.totalorder %s20, 0
      %p187 = por %p185, %p186
      %p188 = scmp.ne.s32.totalorder %s180, %s182
      %p189 = scmp.eq.s32.totalorder %s25, 1
      %p190 = por %p188, %p189
      %p191 = scmp.ne.s32.totalorder %s182, %s183
      %p192 = scmp.eq.s32.totalorder %s25, 0
      %p193 = por %p191, %p192
      %p194 = scmp.ne.s32.totalorder %s182, %s183
      %p195 = scmp.eq.s32.totalorder %s26, 1
      %p196 = por %p194, %p195
      %p198 = scmp.ne.s32.totalorder %s183, %s197
      %p199 = scmp.eq.s32.totalorder %s26, 0
      %p200 = por %p198, %p199
      %s202 = sadd.s32 %s201, 1
      %p205 = scmp.eq.s32.totalorder %s20, 1
      %p206 = scmp.ne.s32.totalorder %s201, %s203
      %p207 = scmp.eq.s32.totalorder %s20, 0
      %p208 = por %p206, %p207
      %p209 = scmp.ne.s32.totalorder %s201, %s203
      %p210 = scmp.eq.s32.totalorder %s25, 1
      %p211 = por %p209, %p210
      %p212 = scmp.ne.s32.totalorder %s203, %s204
      %p213 = scmp.eq.s32.totalorder %s25, 0
      %p214 = por %p212, %p213
      %p215 = scmp.ne.s32.totalorder %s203, %s204
      %p216 = scmp.eq.s32.totalorder %s26, 1
      %p217 = por %p215, %p216
      %p219 = scmp.ne.s32.totalorder %s204, %s218
      %p220 = scmp.eq.s32.totalorder %s26, 0
      %p221 = por %p219, %p220
      %s222 = ssub.s32 %s20, %s27
      %p223 = scmp.eq.s32.totalorder %s222, 0
      %s225 = sadd.s32 %s224, 1
      %s226 = scalar_select %p223, %s224, %s225
      %p229 = pneg %p223
      %p230 = scmp.eq.s32.totalorder %s20, 1
      %p231 = por %p229, %p230
      %p232 = scmp.ne.s32.totalorder %s224, %s227
      %p233 = scmp.eq.s32.totalorder %s20, 0
      %p234 = por %p232, %p233
      %p235 = scmp.ne.s32.totalorder %s224, %s227
      %p236 = scmp.eq.s32.totalorder %s25, 1
      %p237 = por %p235, %p236
      %p238 = scmp.ne.s32.totalorder %s227, %s228
      %p239 = scmp.eq.s32.totalorder %s25, 0
      %p240 = por %p238, %p239
      %p241 = scmp.ne.s32.totalorder %s227, %s228
      %p242 = scmp.eq.s32.totalorder %s26, 1
      %p243 = por %p241, %p242
      %p245 = scmp.ne.s32.totalorder %s228, %s244
      %p246 = scmp.eq.s32.totalorder %s26, 0
      %p247 = por %p245, %p246
      %p248 = scmp.le.s32.totalorder 1, %s20
      %p249 = scmp.lt.s32.totalorder %s20, 3
      %p250 = pnand %p248, %p249
      %p251 = pneg %p250
      // Predicated region
      $region9: #{tpu_custom_call.1} parent=5 // pred_check
        _
      $region10: #{tpu_custom_call.1} parent=5 // pred_check_branch
        %253 = sbr.rel (%p250) target = $region12
      $region11: #{tpu_custom_call.1} parent=5 // pred_region
        %s254 = ssub.s32 %s20, 1
        // Predicated region
        $region13: #{tpu_custom_call.1} parent=11 // pred_check
          %p255 = pneg %p67
        $region14: #{tpu_custom_call.1} parent=11 // pred_check_branch
          %257 = sbr.rel (%p255) target = $region16
        $region15: #{tpu_custom_call.1} parent=11 // pred_region
          _
        $region16: #{tpu_custom_call.1} parent=11 // pred_fallthru
          _
        // Predicated region
        $region17: #{tpu_custom_call.1} parent=11 // pred_check
          %p258 = pneg %p88
        $region18: #{tpu_custom_call.1} parent=11 // pred_check_branch
          %260 = sbr.rel (%p258) target = $region20
        $region19: #{tpu_custom_call.1} parent=11 // pred_region
          _
        $region20: #{tpu_custom_call.1} parent=11 // pred_fallthru
          _
        // Predicated region
        $region21: #{tpu_custom_call.1} parent=11 // pred_check
          %p261 = pneg %p109
        $region22: #{tpu_custom_call.1} parent=11 // pred_check_branch
          %263 = sbr.rel (%p261) target = $region24
        $region23: #{tpu_custom_call.1} parent=11 // pred_region
          _
        $region24: #{tpu_custom_call.1} parent=11 // pred_fallthru
          _
        // Predicated region
        $region25: #{tpu_custom_call.1} parent=11 // pred_check
          %p264 = pneg %p130
        $region26: #{tpu_custom_call.1} parent=11 // pred_check_branch
          %266 = sbr.rel (%p264) target = $region28
        $region27: #{tpu_custom_call.1} parent=11 // pred_region
          _
        $region28: #{tpu_custom_call.1} parent=11 // pred_fallthru
          _
        // Predicated region
        $region29: #{tpu_custom_call.1} parent=11 // pred_check
          %p267 = pneg %p151
        $region30: #{tpu_custom_call.1} parent=11 // pred_check_branch
          %269 = sbr.rel (%p267) target = $region32
        $region31: #{tpu_custom_call.1} parent=11 // pred_region
          _
        $region32: #{tpu_custom_call.1} parent=11 // pred_fallthru
          _
        // Predicated region
        $region33: #{tpu_custom_call.1} parent=11 // pred_check
          %p270 = pneg %p172
        $region34: #{tpu_custom_call.1} parent=11 // pred_check_branch
          %272 = sbr.rel (%p270) target = $region36
        $region35: #{tpu_custom_call.1} parent=11 // pred_region
          _
        $region36: #{tpu_custom_call.1} parent=11 // pred_fallthru
          _
        // Predicated region
        $region37: #{tpu_custom_call.1} parent=11 // pred_check
          %p273 = pneg %p193
        $region38: #{tpu_custom_call.1} parent=11 // pred_check_branch
          %275 = sbr.rel (%p273) target = $region40
        $region39: #{tpu_custom_call.1} parent=11 // pred_region
          _
        $region40: #{tpu_custom_call.1} parent=11 // pred_fallthru
          _
        // Predicated region
        $region41: #{tpu_custom_call.1} parent=11 // pred_check
          %p276 = pneg %p214
        $region42: #{tpu_custom_call.1} parent=11 // pred_check_branch
          %278 = sbr.rel (%p276) target = $region44
        $region43: #{tpu_custom_call.1} parent=11 // pred_region
          _
        $region44: #{tpu_custom_call.1} parent=11 // pred_fallthru
          _
      $region12: #{tpu_custom_call.1} parent=5 // pred_fallthru
        _
      %p279 = scmp.lt.s32.totalorder %s20, 2
      // Predicated region
      $region45: #{tpu_custom_call.1} parent=5 // pred_check
        %p280 = pneg %p279
      $region46: #{tpu_custom_call.1} parent=5 // pred_check_branch
        %282 = sbr.rel (%p280) target = $region48
      $region47: #{tpu_custom_call.1} parent=5 // pred_region
        // Predicated region
        $region49: #{tpu_custom_call.1} parent=47 // pred_check
          %p283 = pneg %p40
        $region50: #{tpu_custom_call.1} parent=47 // pred_check_branch
          %285 = sbr.rel (%p283) target = $region52
        $region51: #{tpu_custom_call.1} parent=47 // pred_region
          %s286 = smul.u32 2, %s20
          %p287 = scmp.lt.s32.totalorder %s286, 3
          %s288 = scalar_select %p287, %s286, 3
          %s289 = smul.addr %s288, 2
          %s290 = scalar_lea.vmem %s0, %s289
          %s291 = smul.u32 2, %s20
        $region52: #{tpu_custom_call.1} parent=47 // pred_fallthru
          _
      $region48: #{tpu_custom_call.1} parent=5 // pred_fallthru
        _
      %p292 = scmp.le.s32.totalorder 1, %s20
      %p293 = scmp.lt.s32.totalorder %s20, 3
      %p294 = pnand %p292, %p293
      %p295 = pneg %p294
      // Predicated region
      $region53: #{tpu_custom_call.1} parent=5 // pred_check
        _
      $region54: #{tpu_custom_call.1} parent=5 // pred_check_branch
        %297 = sbr.rel (%p294) target = $region56
      $region55: #{tpu_custom_call.1} parent=5 // pred_region
        %s298 = ssub.s32 %s20, 1
        %s299 = smul.u32 2, %s25
        %p300 = scmp.lt.s32.totalorder %s299, 3
        %s301 = scalar_select %p300, %s299, 3
        %s302 = smul.addr %s301, 2
        %s303 = scalar_lea.vmem %s0, %s302
        %p304 = pneg %p46
        %p305 = pneg %p43
        %p306 = pneg %p67
        %p307 = pneg %p64
        %p308 = pneg %p88
        %p309 = pneg %p85
        %p310 = pneg %p109
        %p311 = pneg %p106
        %p312 = pneg %p130
        %p313 = pneg %p127
        %p314 = pneg %p151
        %p315 = pneg %p148
        %p316 = pneg %p172
        %p317 = pneg %p169
        %p318 = pneg %p193
        %p319 = pneg %p190
        %p320 = pneg %p214
        %p321 = pneg %p211
        %p322 = pneg %p240
        %p323 = pneg %p237
        %s324 = sand.u32 %s227, 1
        %s325 = scalar_lea.sflag [#allocation4], %s324
        %s326 = sand.u32 %s227, 1
        %s327 = smul.addr %s326, 2
        %s328 = scalar_lea.vmem [#allocation3], %s327
        %s329 = smul.u32 2, %s25
        %p330 = scmp.lt.s32.totalorder %s329, 3
        %s331 = scalar_select %p330, %s329, 3
        %s332 = smul.addr %s331, 2
        %s333 = scalar_lea.vmem %s0, %s332
        %s334 = smul.u32 2, %s25
        %s335 = smul.u32 2, %s25
        %v337 = vld [vmem:[%s333] ss:$2 sm:$0x3]
        %s338 = scalar_lea.vmem %s333, 1
        %v339 = vld [vmem:[%s338] ss:$2 sm:$0x3]
        %v340 = vmul.f32 %v339, 0.01
        %v341 = vld [vmem:[%s1] sm:$0xff]
        %v342 = vld [vmem:[%s1 + $0x8] sm:$0xff]
        %v343 = vld [vmem:[%s1 + $0x10] sm:$0xff]
        %v344 = vld [vmem:[%s1 + $0x18] sm:$0xff]
        %v345 = vld [vmem:[%s1 + $0x20] sm:$0xff]
        %v346 = vld [vmem:[%s1 + $0x28] sm:$0xff]
        %v347 = vld [vmem:[%s1 + $0x30] sm:$0xff]
        %v348 = vld [vmem:[%s1 + $0x38] sm:$0xff]
        %350 = vset.pattern.permute.xlu0 0
        %351 = vperm.xlu0 %350, %v341
        %v352 = vpop.permute.xlu0 %351
        %355 = vset.pattern.permute.xlu0 0
        %356 = vperm.xlu0 %355, %v342
        %v357 = vpop.permute.xlu0 %356
        %360 = vset.pattern.permute.xlu0 0
        %361 = vperm.xlu0 %360, %v343
        %v362 = vpop.permute.xlu0 %361
        %365 = vset.pattern.permute.xlu0 0
        %366 = vperm.xlu0 %365, %v344
        %v367 = vpop.permute.xlu0 %366
        %370 = vset.pattern.permute.xlu0 0
        %371 = vperm.xlu0 %370, %v345
        %v372 = vpop.permute.xlu0 %371
        %375 = vset.pattern.permute.xlu0 0
        %376 = vperm.xlu0 %375, %v346
        %v377 = vpop.permute.xlu0 %376
        %380 = vset.pattern.permute.xlu0 0
        %381 = vperm.xlu0 %380, %v347
        %v382 = vpop.permute.xlu0 %381
        %385 = vset.pattern.permute.xlu0 0
        %386 = vperm.xlu0 %385, %v348
        %v387 = vpop.permute.xlu0 %386
        %v390 = vlaneseq
        %v391 = vshrl.u32 %v390, 7
        %v392 = vsub.s32 0, %v391
        %v393 = vrot.slane %v337, %v392
        %v394 = vlaneseq
        %v395 = vshrl.u32 %v394, 7
        %v396 = vsub.s32 1, %v395
        %v397 = vrot.slane %v337, %v396
        %v400 = vmul.f32 %v352, %v393
        %v401 = vmul.f32 %v352, %v397
        %v402 = vmul.f32 %v357, %v393
        %v403 = vmul.f32 %v357, %v397
        %v404 = vmul.f32 %v362, %v393
        %v405 = vmul.f32 %v362, %v397
        %v406 = vmul.f32 %v367, %v393
        %v407 = vmul.f32 %v367, %v397
        %v408 = vmul.f32 %v372, %v393
        %v409 = vmul.f32 %v372, %v397
        %v410 = vmul.f32 %v377, %v393
        %v411 = vmul.f32 %v377, %v397
        %v412 = vmul.f32 %v382, %v393
        %v413 = vmul.f32 %v382, %v397
        %v414 = vmul.f32 %v387, %v393
        %v415 = vmul.f32 %v387, %v397
        %416 = vset.pattern.permute.xlu0 1
        %417 = vperm.xlu0 %416, %v341
        %v418 = vpop.permute.xlu0 %417
        %420 = vset.pattern.permute.xlu0 1
        %421 = vperm.xlu0 %420, %v342
        %v422 = vpop.permute.xlu0 %421
        %424 = vset.pattern.permute.xlu0 1
        %425 = vperm.xlu0 %424, %v343
        %v426 = vpop.permute.xlu0 %425
        %428 = vset.pattern.permute.xlu0 1
        %429 = vperm.xlu0 %428, %v344
        %v430 = vpop.permute.xlu0 %429
        %432 = vset.pattern.permute.xlu0 1
        %433 = vperm.xlu0 %432, %v345
        %v434 = vpop.permute.xlu0 %433
        %436 = vset.pattern.permute.xlu0 1
        %437 = vperm.xlu0 %436, %v346
        %v438 = vpop.permute.xlu0 %437
        %440 = vset.pattern.permute.xlu0 1
        %441 = vperm.xlu0 %440, %v347
        %v442 = vpop.permute.xlu0 %441
        %444 = vset.pattern.permute.xlu0 1
        %445 = vperm.xlu0 %444, %v348
        %v446 = vpop.permute.xlu0 %445
        %v449 = vlaneseq
        %v450 = vshrl.u32 %v449, 7
        %v451 = vsub.s32 0, %v450
        %v452 = vrot.slane %v340, %v451
        %v453 = vlaneseq
        %v454 = vshrl.u32 %v453, 7
        %v455 = vsub.s32 1, %v454
        %v456 = vrot.slane %v340, %v455
        %v459 = vmul.f32 %v418, %v452
        %v460 = vmul.f32 %v418, %v456
        %v461 = vmul.f32 %v422, %v452
        %v462 = vmul.f32 %v422, %v456
        %v463 = vmul.f32 %v426, %v452
        %v464 = vmul.f32 %v426, %v456
        %v465 = vmul.f32 %v430, %v452
        %v466 = vmul.f32 %v430, %v456
        %v467 = vmul.f32 %v434, %v452
        %v468 = vmul.f32 %v434, %v456
        %v469 = vmul.f32 %v438, %v452
        %v470 = vmul.f32 %v438, %v456
        %v471 = vmul.f32 %v442, %v452
        %v472 = vmul.f32 %v442, %v456
        %v473 = vmul.f32 %v446, %v452
        %v474 = vmul.f32 %v446, %v456
        %v475 = vadd.f32 %v400, %v459
        %v476 = vadd.f32 %v401, %v460
        %v477 = vadd.f32 %v402, %v461
        %v478 = vadd.f32 %v403, %v462
        %v479 = vadd.f32 %v404, %v463
        %v480 = vadd.f32 %v405, %v464
        %v481 = vadd.f32 %v406, %v465
        %v482 = vadd.f32 %v407, %v466
        %v483 = vadd.f32 %v408, %v467
        %v484 = vadd.f32 %v409, %v468
        %v485 = vadd.f32 %v410, %v469
        %v486 = vadd.f32 %v411, %v470
        %v487 = vadd.f32 %v412, %v471
        %v488 = vadd.f32 %v413, %v472
        %v489 = vadd.f32 %v414, %v473
        %v490 = vadd.f32 %v415, %v474
        %v491 = vld [vmem:[%s2] sm:$0xff]
        %v492 = vld [vmem:[%s2 + $0x8] sm:$0xff]
        %v493 = vld [vmem:[%s2 + $0x10] sm:$0xff]
        %v494 = vld [vmem:[%s2 + $0x18] sm:$0xff]
        %v495 = vld [vmem:[%s2 + $0x20] sm:$0xff]
        %v496 = vld [vmem:[%s2 + $0x28] sm:$0xff]
        %v497 = vld [vmem:[%s2 + $0x30] sm:$0xff]
        %v498 = vld [vmem:[%s2 + $0x38] sm:$0xff]
        %500 = vset.pattern.permute.xlu0 0
        %501 = vperm.xlu0 %500, %v491
        %v502 = vpop.permute.xlu0 %501
        %505 = vset.pattern.permute.xlu0 0
        %506 = vperm.xlu0 %505, %v492
        %v507 = vpop.permute.xlu0 %506
        %510 = vset.pattern.permute.xlu0 0
        %511 = vperm.xlu0 %510, %v493
        %v512 = vpop.permute.xlu0 %511
        %515 = vset.pattern.permute.xlu0 0
        %516 = vperm.xlu0 %515, %v494
        %v517 = vpop.permute.xlu0 %516
        %520 = vset.pattern.permute.xlu0 0
        %521 = vperm.xlu0 %520, %v495
        %v522 = vpop.permute.xlu0 %521
        %525 = vset.pattern.permute.xlu0 0
        %526 = vperm.xlu0 %525, %v496
        %v527 = vpop.permute.xlu0 %526
        %530 = vset.pattern.permute.xlu0 0
        %531 = vperm.xlu0 %530, %v497
        %v532 = vpop.permute.xlu0 %531
        %535 = vset.pattern.permute.xlu0 0
        %536 = vperm.xlu0 %535, %v498
        %v537 = vpop.permute.xlu0 %536
        %v539 = vadd.f32 %v475, %v502
        %v540 = vadd.f32 %v476, %v502
        %v541 = vadd.f32 %v477, %v507
        %v542 = vadd.f32 %v478, %v507
        %v543 = vadd.f32 %v479, %v512
        %v544 = vadd.f32 %v480, %v512
        %v545 = vadd.f32 %v481, %v517
        %v546 = vadd.f32 %v482, %v517
        %v547 = vadd.f32 %v483, %v522
        %v548 = vadd.f32 %v484, %v522
        %v549 = vadd.f32 %v485, %v527
        %v550 = vadd.f32 %v486, %v527
        %v551 = vadd.f32 %v487, %v532
        %v552 = vadd.f32 %v488, %v532
        %v553 = vadd.f32 %v489, %v537
        %v554 = vadd.f32 %v490, %v537
        %v555 = vpack.c.bf16 %v541, %v539
        %v556 = vpack.c.bf16 %v542, %v540
        %v557 = vpack.c.bf16 %v545, %v543
        %v558 = vpack.c.bf16 %v546, %v544
        %v559 = vpack.c.bf16 %v549, %v547
        %v560 = vpack.c.bf16 %v550, %v548
        %v561 = vpack.c.bf16 %v553, %v551
        %v562 = vpack.c.bf16 %v554, %v552
        %v563 = vtanh.bf16.pop %v555
        %v564 = vtanh.bf16.pop %v556
        %v565 = vtanh.bf16.pop %v557
        %v566 = vtanh.bf16.pop %v558
        %v567 = vtanh.bf16.pop %v559
        %v568 = vtanh.bf16.pop %v560
        %v569 = vtanh.bf16.pop %v561
        %v570 = vtanh.bf16.pop %v562
        %v571 = vld [vmem:[%s3] sm:$0xf]
        %v572 = vld [vmem:[%s3 + $0x4] sm:$0xf]
        %v573 = vld [vmem:[%s3 + $0x8] sm:$0xf]
        %v574 = vld [vmem:[%s3 + $0xc] sm:$0xf]
        %v575 = vld [vmem:[%s3 + $0x10] sm:$0xf]
        %v576 = vld [vmem:[%s3 + $0x14] sm:$0xf]
        %v577 = vld [vmem:[%s3 + $0x18] sm:$0xf]
        %v578 = vld [vmem:[%s3 + $0x1c] sm:$0xf]
        %v579 = vld [vmem:[%s4] sm:$0xff]
        %v580 = vld [vmem:[%s4 + $0x8] sm:$0xff]
        %v581 = vld [vmem:[%s4 + $0x10] sm:$0xff]
        %v582 = vld [vmem:[%s4 + $0x18] sm:$0xff]
        %v583 = vld [vmem:[%s4 + $0x20] sm:$0xff]
        %v584 = vld [vmem:[%s4 + $0x28] sm:$0xff]
        %v585 = vld [vmem:[%s4 + $0x30] sm:$0xff]
        %v586 = vld [vmem:[%s4 + $0x38] sm:$0xff]
        %588 = vset.pattern.permute.xlu0 0
        %589 = vperm.xlu0 %588, %v579
        %v590 = vpop.permute.xlu0 %589
        %593 = vset.pattern.permute.xlu0 0
        %594 = vperm.xlu0 %593, %v580
        %v595 = vpop.permute.xlu0 %594
        %598 = vset.pattern.permute.xlu0 0
        %599 = vperm.xlu0 %598, %v581
        %v600 = vpop.permute.xlu0 %599
        %603 = vset.pattern.permute.xlu0 0
        %604 = vperm.xlu0 %603, %v582
        %v605 = vpop.permute.xlu0 %604
        %608 = vset.pattern.permute.xlu0 0
        %609 = vperm.xlu0 %608, %v583
        %v610 = vpop.permute.xlu0 %609
        %613 = vset.pattern.permute.xlu0 0
        %614 = vperm.xlu0 %613, %v584
        %v615 = vpop.permute.xlu0 %614
        %618 = vset.pattern.permute.xlu0 0
        %619 = vperm.xlu0 %618, %v585
        %v620 = vpop.permute.xlu0 %619
        %623 = vset.pattern.permute.xlu0 0
        %624 = vperm.xlu0 %623, %v586
        %v625 = vpop.permute.xlu0 %624
        %v635 = vunpack.c.l.b16 %v571
        %v636 = vunpack.c.l.b16 %v572
        %v637 = vunpack.c.l.b16 %v573
        %v638 = vunpack.c.l.b16 %v574
        %v639 = vunpack.c.l.b16 %v575
        %v640 = vunpack.c.l.b16 %v576
        %v641 = vunpack.c.l.b16 %v577
        %v642 = vunpack.c.l.b16 %v578
        %v643 = vpack.c.b16 %v636, %v635
        %v644 = vpack.c.b16 %v638, %v637
        %v645 = vpack.c.b16 %v640, %v639
        %v646 = vpack.c.b16 %v642, %v641
        %vm647 = vcmask 523264
        %v649 = vsel %vm647, %v643, 0
        %v652 = vsel %vm647, %v644, 0
        %v655 = vsel %vm647, %v645, 0
        %v658 = vsel %vm647, %v646, 0
        %660 = vmatprep.subr.bf16.mxu0 0
        %661 = vmatpush1.bf16.msra.mxu0 0
        %662 = vmatprep.subr.bf16.mxu0 0
        %663 = vmatpush1.bf16.msra.mxu0 0
        %664 = vmatprep.subr.bf16.mxu0 0
        %665 = vmatpush1.bf16.msra.mxu0 0
        %666 = vmatprep.subr.bf16.mxu0 0
        %667 = vmatpush1.bf16.msra.mxu0 0
        %668 = vmatprep.subr.bf16.mxu0 %v570
        %669 = vmatpush1.bf16.msra.mxu0 %v569
        %670 = vmatprep.subr.bf16.mxu0 %v568
        %671 = vmatpush1.bf16.msra.mxu0 %v567
        %672 = vmatprep.subr.bf16.mxu0 %v566
        %673 = vmatpush1.bf16.msra.mxu0 %v565
        %674 = vmatprep.subr.bf16.mxu0 %v564
        %675 = vmatpush1.bf16.msra.mxu0 %v563
        %676 = vmatprep.subr.bf16.mxu0 0
        %677 = vmatpush2.bf16.msra.mxu0 0
        %678 = vmatprep.subr.bf16.mxu0 0
        %679 = vmatpush2.bf16.msra.mxu0 0
        %680 = vmatprep.subr.bf16.mxu0 0
        %681 = vmatpush2.bf16.msra.mxu0 0
        %682 = vmatprep.subr.bf16.mxu0 0
        %683 = vmatpush2.bf16.msra.mxu0 0
        %684 = vmatprep.subr.bf16.mxu0 0
        %685 = vmatpush2.bf16.msra.mxu0 0
        %686 = vmatprep.subr.bf16.mxu0 0
        %687 = vmatpush2.bf16.msra.mxu0 0
        %688 = vmatprep.subr.bf16.mxu0 0
        %689 = vmatpush2.bf16.msra.mxu0 0
        %690 = vmatprep.subr.bf16.mxu0 0
        %691 = vmatpush2.bf16.msra.mxu0 0
        %692 = vmatprep.mubr.bf16.mxu0 0
        %693 = vmatmul.mubr.bf16.gmra.mxu0 %v649
        %v694 = vpop.f32.mrf.mxu0
        %v695 = vadd.f32 %v590, %v694
        %v696 = vpop.f32.mrf.mxu0
        %v697 = vadd.f32 %v590, %v696
        %v698 = vpop.f32.mrf.mxu0
        %v699 = vadd.f32 %v595, %v698
        %v700 = vpop.f32.mrf.mxu0
        %v701 = vadd.f32 %v595, %v700
        %702 = vmatprep.mubr.bf16.mxu0 0
        %703 = vmatmul.mubr.bf16.gmra.mxu0 %v652
        %v704 = vpop.f32.mrf.mxu0
        %v705 = vadd.f32 %v600, %v704
        %v706 = vpop.f32.mrf.mxu0
        %v707 = vadd.f32 %v600, %v706
        %v708 = vpop.f32.mrf.mxu0
        %v709 = vadd.f32 %v605, %v708
        %v710 = vpop.f32.mrf.mxu0
        %v711 = vadd.f32 %v605, %v710
        %712 = vmatprep.mubr.bf16.mxu0 0
        %713 = vmatmul.mubr.bf16.gmra.mxu0 %v655
        %v714 = vpop.f32.mrf.mxu0
        %v715 = vadd.f32 %v610, %v714
        %v716 = vpop.f32.mrf.mxu0
        %v717 = vadd.f32 %v610, %v716
        %v718 = vpop.f32.mrf.mxu0
        %v719 = vadd.f32 %v615, %v718
        %v720 = vpop.f32.mrf.mxu0
        %v721 = vadd.f32 %v615, %v720
        %722 = vmatprep.mubr.bf16.mxu0 0
        %723 = vmatmul.mubr.bf16.gmra.mxu0 %v658
        %v724 = vpop.f32.mrf.mxu0
        %v725 = vadd.f32 %v620, %v724
        %v726 = vpop.f32.mrf.mxu0
        %v727 = vadd.f32 %v620, %v726
        %v728 = vpop.f32.mrf.mxu0
        %v729 = vadd.f32 %v625, %v728
        %v730 = vpop.f32.mrf.mxu0
        %v731 = vadd.f32 %v625, %v730
        %732 = vdwg.mxu0
        %v733 = vpack.c.bf16 %v699, %v695
        %v734 = vpack.c.bf16 %v701, %v697
        %v735 = vpack.c.bf16 %v709, %v705
        %v736 = vpack.c.bf16 %v711, %v707
        %v737 = vpack.c.bf16 %v719, %v715
        %v738 = vpack.c.bf16 %v721, %v717
        %v739 = vpack.c.bf16 %v729, %v725
        %v740 = vpack.c.bf16 %v731, %v727
        %v741 = vtanh.bf16.pop %v733
        %v742 = vtanh.bf16.pop %v734
        %v743 = vtanh.bf16.pop %v735
        %v744 = vtanh.bf16.pop %v736
        %v745 = vtanh.bf16.pop %v737
        %v746 = vtanh.bf16.pop %v738
        %v747 = vtanh.bf16.pop %v739
        %v748 = vtanh.bf16.pop %v740
        %v749 = vld [vmem:[%s5] sm:$0xf]
        %v750 = vld [vmem:[%s5 + $0x4] sm:$0xf]
        %v751 = vld [vmem:[%s5 + $0x8] sm:$0xf]
        %v752 = vld [vmem:[%s5 + $0xc] sm:$0xf]
        %v753 = vld [vmem:[%s5 + $0x10] sm:$0xf]
        %v754 = vld [vmem:[%s5 + $0x14] sm:$0xf]
        %v755 = vld [vmem:[%s5 + $0x18] sm:$0xf]
        %v756 = vld [vmem:[%s5 + $0x1c] sm:$0xf]
        %v757 = vld [vmem:[%s6] sm:$0xff]
        %v758 = vld [vmem:[%s6 + $0x8] sm:$0xff]
        %v759 = vld [vmem:[%s6 + $0x10] sm:$0xff]
        %v760 = vld [vmem:[%s6 + $0x18] sm:$0xff]
        %v761 = vld [vmem:[%s6 + $0x20] sm:$0xff]
        %v762 = vld [vmem:[%s6 + $0x28] sm:$0xff]
        %v763 = vld [vmem:[%s6 + $0x30] sm:$0xff]
        %v764 = vld [vmem:[%s6 + $0x38] sm:$0xff]
        %766 = vset.pattern.permute.xlu0 0
        %767 = vperm.xlu0 %766, %v757
        %v768 = vpop.permute.xlu0 %767
        %771 = vset.pattern.permute.xlu0 0
        %772 = vperm.xlu0 %771, %v758
        %v773 = vpop.permute.xlu0 %772
        %776 = vset.pattern.permute.xlu0 0
        %777 = vperm.xlu0 %776, %v759
        %v778 = vpop.permute.xlu0 %777
        %781 = vset.pattern.permute.xlu0 0
        %782 = vperm.xlu0 %781, %v760
        %v783 = vpop.permute.xlu0 %782
        %786 = vset.pattern.permute.xlu0 0
        %787 = vperm.xlu0 %786, %v761
        %v788 = vpop.permute.xlu0 %787
        %791 = vset.pattern.permute.xlu0 0
        %792 = vperm.xlu0 %791, %v762
        %v793 = vpop.permute.xlu0 %792
        %796 = vset.pattern.permute.xlu0 0
        %797 = vperm.xlu0 %796, %v763
        %v798 = vpop.permute.xlu0 %797
        %801 = vset.pattern.permute.xlu0 0
        %802 = vperm.xlu0 %801, %v764
        %v803 = vpop.permute.xlu0 %802
        %v813 = vunpack.c.l.b16 %v749
        %v814 = vunpack.c.l.b16 %v750
        %v815 = vunpack.c.l.b16 %v751
        %v816 = vunpack.c.l.b16 %v752
        %v817 = vunpack.c.l.b16 %v753
        %v818 = vunpack.c.l.b16 %v754
        %v819 = vunpack.c.l.b16 %v755
        %v820 = vunpack.c.l.b16 %v756
        %v821 = vpack.c.b16 %v814, %v813
        %v822 = vpack.c.b16 %v816, %v815
        %v823 = vpack.c.b16 %v818, %v817
        %v824 = vpack.c.b16 %v820, %v819
        %v826 = vsel %vm647, %v821, 0
        %v829 = vsel %vm647, %v822, 0
        %v832 = vsel %vm647, %v823, 0
        %v835 = vsel %vm647, %v824, 0
        %837 = vmatprep.subr.bf16.mxu0 0
        %838 = vmatpush1.bf16.msra.mxu0 0
        %839 = vmatprep.subr.bf16.mxu0 0
        %840 = vmatpush1.bf16.msra.mxu0 0
        %841 = vmatprep.subr.bf16.mxu0 0
        %842 = vmatpush1.bf16.msra.mxu0 0
        %843 = vmatprep.subr.bf16.mxu0 0
        %844 = vmatpush1.bf16.msra.mxu0 0
        %845 = vmatprep.subr.bf16.mxu0 %v748
        %846 = vmatpush1.bf16.msra.mxu0 %v747
        %847 = vmatprep.subr.bf16.mxu0 %v746
        %848 = vmatpush1.bf16.msra.mxu0 %v745
        %849 = vmatprep.subr.bf16.mxu0 %v744
        %850 = vmatpush1.bf16.msra.mxu0 %v743
        %851 = vmatprep.subr.bf16.mxu0 %v742
        %852 = vmatpush1.bf16.msra.mxu0 %v741
        %853 = vmatprep.subr.bf16.mxu0 0
        %854 = vmatpush2.bf16.msra.mxu0 0
        %855 = vmatprep.subr.bf16.mxu0 0
        %856 = vmatpush2.bf16.msra.mxu0 0
        %857 = vmatprep.subr.bf16.mxu0 0
        %858 = vmatpush2.bf16.msra.mxu0 0
        %859 = vmatprep.subr.bf16.mxu0 0
        %860 = vmatpush2.bf16.msra.mxu0 0
        %861 = vmatprep.subr.bf16.mxu0 0
        %862 = vmatpush2.bf16.msra.mxu0 0
        %863 = vmatprep.subr.bf16.mxu0 0
        %864 = vmatpush2.bf16.msra.mxu0 0
        %865 = vmatprep.subr.bf16.mxu0 0
        %866 = vmatpush2.bf16.msra.mxu0 0
        %867 = vmatprep.subr.bf16.mxu0 0
        %868 = vmatpush2.bf16.msra.mxu0 0
        %869 = vmatprep.mubr.bf16.mxu0 0
        %870 = vmatmul.mubr.bf16.gmra.mxu0 %v826
        %v871 = vpop.f32.mrf.mxu0
        %v872 = vadd.f32 %v768, %v871
        %v873 = vpop.f32.mrf.mxu0
        %v874 = vadd.f32 %v768, %v873
        %v875 = vpop.f32.mrf.mxu0
        %v876 = vadd.f32 %v773, %v875
        %v877 = vpop.f32.mrf.mxu0
        %v878 = vadd.f32 %v773, %v877
        %879 = vmatprep.mubr.bf16.mxu0 0
        %880 = vmatmul.mubr.bf16.gmra.mxu0 %v829
        %v881 = vpop.f32.mrf.mxu0
        %v882 = vadd.f32 %v778, %v881
        %v883 = vpop.f32.mrf.mxu0
        %v884 = vadd.f32 %v778, %v883
        %v885 = vpop.f32.mrf.mxu0
        %v886 = vadd.f32 %v783, %v885
        %v887 = vpop.f32.mrf.mxu0
        %v888 = vadd.f32 %v783, %v887
        %889 = vmatprep.mubr.bf16.mxu0 0
        %890 = vmatmul.mubr.bf16.gmra.mxu0 %v832
        %v891 = vpop.f32.mrf.mxu0
        %v892 = vadd.f32 %v788, %v891
        %v893 = vpop.f32.mrf.mxu0
        %v894 = vadd.f32 %v788, %v893
        %v895 = vpop.f32.mrf.mxu0
        %v896 = vadd.f32 %v793, %v895
        %v897 = vpop.f32.mrf.mxu0
        %v898 = vadd.f32 %v793, %v897
        %899 = vmatprep.mubr.bf16.mxu0 0
        %900 = vmatmul.mubr.bf16.gmra.mxu0 %v835
        %v901 = vpop.f32.mrf.mxu0
        %v902 = vadd.f32 %v798, %v901
        %v903 = vpop.f32.mrf.mxu0
        %v904 = vadd.f32 %v798, %v903
        %v905 = vpop.f32.mrf.mxu0
        %v906 = vadd.f32 %v803, %v905
        %v907 = vpop.f32.mrf.mxu0
        %v908 = vadd.f32 %v803, %v907
        %909 = vdwg.mxu0
        %v910 = vpack.c.bf16 %v876, %v872
        %v911 = vpack.c.bf16 %v878, %v874
        %v912 = vpack.c.bf16 %v886, %v882
        %v913 = vpack.c.bf16 %v888, %v884
        %v914 = vpack.c.bf16 %v896, %v892
        %v915 = vpack.c.bf16 %v898, %v894
        %v916 = vpack.c.bf16 %v906, %v902
        %v917 = vpack.c.bf16 %v908, %v904
        %v918 = vtanh.bf16.pop %v910
        %v919 = vtanh.bf16.pop %v911
        %v920 = vtanh.bf16.pop %v912
        %v921 = vtanh.bf16.pop %v913
        %v922 = vtanh.bf16.pop %v914
        %v923 = vtanh.bf16.pop %v915
        %v924 = vtanh.bf16.pop %v916
        %v925 = vtanh.bf16.pop %v917
        %v926 = vld [vmem:[%s7] sm:$0x1]
        %v927 = vld [vmem:[#allocation2] sm:$0x1]
        %929 = vset.pattern.permute.xlu0 0
        %930 = vperm.xlu0 %929, %v927
        %v931 = vpop.permute.xlu0 %930
        %v933 = vlaneseq
        %v934 = vshrl.u32 %v933, 7
        %v935 = vsub.s32 0, %v934
        %v936 = vrot.slane %v931, %v935
        %v938 = vsel %vm647, %v926, 0
        %940 = vmatprep.subr.bf16.mxu0 0
        %941 = vmatpush1.bf16.msra.mxu0 0
        %942 = vmatprep.subr.bf16.mxu0 0
        %943 = vmatpush1.bf16.msra.mxu0 0
        %944 = vmatprep.subr.bf16.mxu0 0
        %945 = vmatpush1.bf16.msra.mxu0 0
        %946 = vmatprep.subr.bf16.mxu0 0
        %947 = vmatpush1.bf16.msra.mxu0 0
        %948 = vmatprep.subr.bf16.mxu0 %v925
        %949 = vmatpush1.bf16.msra.mxu0 %v924
        %950 = vmatprep.subr.bf16.mxu0 %v923
        %951 = vmatpush1.bf16.msra.mxu0 %v922
        %952 = vmatprep.subr.bf16.mxu0 %v921
        %953 = vmatpush1.bf16.msra.mxu0 %v920
        %954 = vmatprep.subr.bf16.mxu0 %v919
        %955 = vmatpush1.bf16.msra.mxu0 %v918
        %956 = vmatprep.subr.bf16.mxu0 0
        %957 = vmatpush2.bf16.msra.mxu0 0
        %958 = vmatprep.subr.bf16.mxu0 0
        %959 = vmatpush2.bf16.msra.mxu0 0
        %960 = vmatprep.subr.bf16.mxu0 0
        %961 = vmatpush2.bf16.msra.mxu0 0
        %962 = vmatprep.subr.bf16.mxu0 0
        %963 = vmatpush2.bf16.msra.mxu0 0
        %964 = vmatprep.subr.bf16.mxu0 0
        %965 = vmatpush2.bf16.msra.mxu0 0
        %966 = vmatprep.subr.bf16.mxu0 0
        %967 = vmatpush2.bf16.msra.mxu0 0
        %968 = vmatprep.subr.bf16.mxu0 0
        %969 = vmatpush2.bf16.msra.mxu0 0
        %970 = vmatprep.subr.bf16.mxu0 0
        %971 = vmatpush2.bf16.msra.mxu0 0
        %972 = vmatprep.mubr.bf16.mxu0 0
        %973 = vmatmul.mubr.bf16.gmra.mxu0 %v938
        %v974 = vpop.f32.mrf.mxu0
        %v975 = vadd.f32 %v936, %v974
        %v976 = vpop.f32.mrf.mxu0
        %v977 = vadd.f32 %v936, %v976
        %v978 = vpop.f32.mrf.mxu0
        %v979 = vpop.f32.mrf.mxu0
        %980 = vdwg.mxu0
        %v983 = vcombine.low %v975, %v977
        %v985 = vunpack.c.l.s4 1966171168
        %v986 = vunpack.c.0.s8 %v985
        %v987 = vlaneseq
        %v988 = vshrl.u32 %v987, 7
        %v989 = vsub.s32 %v986, %v988
        %v990 = vrot.slane %v983, %v989
        %v992 = vunpack.c.l.s4 1966171168
        %v993 = vunpack.c.0.s8 %v992
        %v994 = vlaneseq
        %v995 = vshrl.u32 %v994, 7
        %v996 = vsub.s32 %v993, %v995
        %v997 = vrot.slane %v990, %v996
        %v999 = vlaneseq
        %vm1000 = vcmp.ge.s32.totalorder %v999, 0
        %vm1001 = vcmp.lt.s32.totalorder %v999, 256
        %vm1002 = vmand %vm1000, %vm1001
        %1003 = vst.msk [vmem:[%s328] sm:$0x3] %vm1002, %v997
        %s1004 = sand.u32 %s227, 1
        %s1005 = scalar_lea.sflag [#allocation4], %s1004
        %s1006 = sand.u32 %s227, 1
        %s1007 = smul.addr %s1006, 2
        %s1008 = scalar_lea.vmem [#allocation3], %s1007
        // Predicated region
        $region57: #{tpu_custom_call.1} parent=55 // pred_check
          %p1009 = pneg %p237
        $region58: #{tpu_custom_call.1} parent=55 // pred_check_branch
          %1011 = sbr.rel (%p1009) target = $region60
        $region59: #{tpu_custom_call.1} parent=55 // pred_region
          %s1012 = smul.u32 2, %s25
          %s1014 = ssub.s32 32, 32
          %1015 = vsyncadd %s1005, %s1014
          %s1016 = smul.addr %s1012, 16
          %s1017 = scalar_lea.hbm %s9, %s1016
          %s1019 = sshll.u32 %s1008, 4
          %s1020 = int_to_ptr.vmem [resolvable:$true] %s1019
          %1022 = dma.vmem_to_hbm [thread:$0]  %s1020, 32, %s1017, %s1005
        $region60: #{tpu_custom_call.1} parent=55 // pred_fallthru
          _
      $region56: #{tpu_custom_call.1} parent=5 // pred_fallthru
        _
      %p1023 = scmp.le.s32.totalorder 2, %s20
      // Predicated region
      $region61: #{tpu_custom_call.1} parent=5 // pred_check
        %p1024 = pneg %p1023
      $region62: #{tpu_custom_call.1} parent=5 // pred_check_branch
        %1026 = sbr.rel (%p1024) target = $region64
      $region63: #{tpu_custom_call.1} parent=5 // pred_region
        %s1027 = ssub.s32 %s20, 2
        // Predicated region
        $region65: #{tpu_custom_call.1} parent=63 // pred_check
          %p1028 = pneg %p243
        $region66: #{tpu_custom_call.1} parent=63 // pred_check_branch
          %1030 = sbr.rel (%p1028) target = $region68
        $region67: #{tpu_custom_call.1} parent=63 // pred_region
          %s1031 = sand.u32 %s228, 1
          %s1032 = scalar_lea.sflag [#allocation4], %s1031
          %s1033 = sand.u32 %s228, 1
          %s1034 = smul.addr %s1033, 2
          %s1035 = scalar_lea.vmem [#allocation3], %s1034
          %1036 = dma.done %s1032, 32
        $region68: #{tpu_custom_call.1} parent=63 // pred_fallthru
          _
      $region64: #{tpu_custom_call.1} parent=5 // pred_fallthru
        _
    $region6: #{tpu_custom_call.1} parent=1 // loop_footer
      %s24 = sadd.s32 1, %s20
    $region7: #{tpu_custom_call.1} parent=1 // loop_footer_branch
      %19 = sbr.rel target = $region3
    $region8: #{tpu_custom_call.1} parent=1 // loop_exit
      _
    %1037 = vsyncpa [#allocation4], 1
    %s1038 = scalar_lea.sflag [#allocation4], 1
    %1039 = vsyncpa %s1038, 1

</llo_original>
